<compile_context>
chip_gen: v5e
topology: v5e:2x2
jax: 0.10.0
libtpu: 0.0.40
codegen_flags: <defaults>
</compile_context>

<pallas_src>
import functools

import jax
import jax.numpy as jnp
from jax.experimental import pallas as pl
from jax.experimental.pallas import tpu as pltpu

_LANE = 128           # TPU lane width
_MAX_TILE_ROWS = 8192  # keeps double-buffered VMEM well under v7x's 64 MiB
_VMEM_BYTES_PER_ROW = 4096  # conservative: x tile + h1/h2 temps + padded out, double-buffered


def _round_up(n, m):
    return ((n + m - 1) // m) * m


def _detect_tensorcores():
    """Best-effort TensorCore count per chip (v7x: 2, v5e/v6e: 1). Falls back to 1."""
    try:
        dev = jax.devices()[0]
        for attr in ("num_cores", "core_count", "num_tensorcores"):
            n = getattr(dev, attr, None)
            if isinstance(n, int) and n >= 1:
                return int(n)
    except Exception:
        pass
    return 1


def _choose_tile(batch, row_align, tile_m, n_cores):
    """Pick the per-step batch tile.

    Goals: fewest grid steps (per-step overhead ~600 cycles dominates this kernel);
    on multi-TC chips make the step count a multiple of n_cores (>= n_cores) so the
    'parallel' batch axis shards evenly; cap the tile so VMEM stays comfortable.
    """
    tile_cap = max(row_align, min(int(tile_m), _MAX_TILE_ROWS))
    tile_cap = _round_up(tile_cap, row_align)
    aligned = _round_up(batch, row_align)
    tile = min(tile_cap, aligned)
    if n_cores > 1 and aligned > row_align:
        steps = pl.cdiv(aligned, tile)
        target = _round_up(max(steps, n_cores), n_cores)
        tile = _round_up(pl.cdiv(aligned, target), row_align)
    if tile >= batch:
        return batch  # single full-extent block: always layout-legal, fewest steps
    return tile


def _policy_kernel(x_ref, w1_ref, b1_ref, w2_ref, b2_ref, w3_ref, b3_ref, o_ref):
    # Fused MLP hot path: 3 MXU matmuls (f32 accumulation) + VPU relu + EUP tanh,
    # all in VMEM. Inter-layer activations cast to the weight dtype so the MXU runs
    # at its native bf16 rate on the bf16 path. Output tile is lane-dense (128 wide).
    x = x_ref[...]

    h1 = jnp.dot(x, w1_ref[...], preferred_element_type=jnp.float32) + b1_ref[...]
    h1 = jnp.maximum(h1, 0.0)

    h2 = (
        jnp.dot(h1.astype(w2_ref.dtype), w2_ref[...], preferred_element_type=jnp.float32)
        + b2_ref[...]
    )
    h2 = jnp.maximum(h2, 0.0)

    h3 = (
        jnp.dot(h2.astype(w3_ref.dtype), w3_ref[...], preferred_element_type=jnp.float32)
        + b3_ref[...]
    )
    o_ref[...] = jnp.tanh(h3).astype(o_ref.dtype)


@functools.partial(jax.jit, static_argnames=("tile_m", "use_bf16", "num_cores"))
def policy_forward(x, params, *, tile_m=2048, use_bf16=True, num_cores=None):
    """x: (batch, state_dim) float32.

    params: dict with weights pre-transposed to (in, out) and biases as (1, out):
      w1 (state_dim, hidden), b1 (1, hidden), w2 (hidden, hidden), b2 (1, hidden),
      w3 (hidden, action_dim), b3 (1, action_dim).
    Returns (batch, action_dim) float32.
    """
    w1, b1, w2, b2, w3, b3 = (
        params["w1"], params["b1"], params["w2"], params["b2"], params["w3"], params["b3"]
    )
    batch, state_dim = x.shape
    hidden = w1.shape[1]
    action_dim = w3.shape[1]

    # Guard against raw PyTorch (out, in) weights being passed in by mistake.
    assert w1.shape == (state_dim, hidden), "w1 must be (state_dim, hidden) = fc1.weight.T"
    assert b1.shape == (1, hidden), "b1 must be a (1, hidden) row"
    assert w2.shape == (hidden, hidden) and b2.shape == (1, hidden)
    assert w3.shape == (hidden, action_dim) and b3.shape == (1, action_dim)

    compute_dtype = jnp.bfloat16 if use_bf16 else jnp.float32
    xc = x.astype(compute_dtype)
    w1c = w1.astype(compute_dtype)
    w2c = w2.astype(compute_dtype)
    w3c = w3.astype(compute_dtype)
    # Biases stay f32: they're added to the f32 MXU accumulator.

    # Lane-dense output: pad W3 / b3 columns to a multiple of 128 (tiny, one-time)
    # so every output store is a full-lane `vst`, then slice columns afterwards.
    out_cols = _round_up(action_dim, _LANE)
    if out_cols != action_dim:
        w3c = jnp.pad(w3c, ((0, 0), (0, out_cols - action_dim)))
        b3p = jnp.pad(b3, ((0, 0), (0, out_cols - action_dim)))
    else:
        b3p = b3

    # Batch tile: multiple of the sublane packing (8 f32 / 16 bf16), as large as
    # possible (few grid steps), multi-TC aware. No x padding: Pallas masks the
    # ragged last block (garbage rows are never written to the output).
    row_align = 16 if use_bf16 else 8
    n_cores = _detect_tensorcores() if num_cores is None else int(num_cores)
    tile = _choose_tile(batch, row_align, tile_m, n_cores)
    grid = (pl.cdiv(batch, tile),)

    # Weights / biases: full-array blocks with constant index_maps -> DMA'd once,
    # VMEM-resident across all grid steps.
    pinned = lambda a: pl.BlockSpec(a.shape, lambda i: (0, 0))

    compiler_kwargs = {"dimension_semantics": ("parallel",)}
    vmem_est = tile * _VMEM_BYTES_PER_ROW + (2 << 20)
    if vmem_est > (16 << 20):  # above v5e's default scoped-VMEM limit
        compiler_kwargs["vmem_limit_bytes"] = int(min(vmem_est, 48 << 20))

    out_padded = pl.pallas_call(
        _policy_kernel,
        out_shape=jax.ShapeDtypeStruct((batch, out_cols), jnp.float32),
        grid=grid,
        in_specs=[
            pl.BlockSpec((tile, state_dim), lambda i: (i, 0)),  # x: tiled over batch
            pinned(w1c), pinned(b1),
            pinned(w2c), pinned(b2),
            pinned(w3c), pinned(b3p),
        ],
        out_specs=pl.BlockSpec((tile, out_cols), lambda i: (i, 0)),
        compiler_params=pltpu.CompilerParams(**compiler_kwargs),
    )(xc, w1c, b1, w2c, b2, w3c, b3p)

    if out_cols != action_dim:
        return out_padded[:, :action_dim]
    return out_padded


def init_policy_params(key, state_dim, action_dim, hidden_size=64):
    """Deterministic synthetic init mirroring nn.Linear shapes.

    PyTorch stores weight as (out, in); we store the transpose (in, out) so the
    kernel computes x @ W directly. Biases stored as (1, out) rows.
    """
    keys = jax.random.split(key, 6)

    def linear(kw, kb, fan_in, fan_out):
        bound = 1.0 / jnp.sqrt(fan_in)
        w = jax.random.uniform(kw, (fan_in, fan_out), jnp.float32, -bound, bound)
        b = jax.random.uniform(kb, (1, fan_out), jnp.float32, -bound, bound)
        return w, b

    w1, b1 = linear(keys[0], keys[1], state_dim, hidden_size)
    w2, b2 = linear(keys[2], keys[3], hidden_size, hidden_size)
    w3, b3 = linear(keys[4], keys[5], hidden_size, action_dim)
    return {"w1": w1, "b1": b1, "w2": w2, "b2": b2, "w3": w3, "b3": b3}


def _reference_forward(x, p):
    h1 = jnp.maximum(x @ p["w1"] + p["b1"], 0.0)
    h2 = jnp.maximum(h1 @ p["w2"] + p["b2"], 0.0)
    return jnp.tanh(h2 @ p["w3"] + p["b3"])


if __name__ == "__main__":
    key = jax.random.PRNGKey(0)
    k_param, k_small, k_big, k_rag = jax.random.split(key, 4)

    state_dim, action_dim, hidden = 8, 4, 64
    params = init_policy_params(k_param, state_dim, action_dim, hidden)

    # 1) Small batch (single full-extent tile), f32 precise path.
    x_small = jax.random.normal(k_small, (8, state_dim), jnp.float32)
    out_small = jax.block_until_ready(policy_forward(x_small, params, use_bf16=False))
    ref_small = _reference_forward(x_small, params)
    assert out_small.shape == (8, action_dim)
    assert jnp.allclose(out_small, ref_small, atol=1e-5, rtol=1e-5)

    # 2) Batched rollout (single large tile on the default settings), f32 precise.
    x_big = jax.random.normal(k_big, (1024, state_dim), jnp.float32)
    out_big = jax.block_until_ready(policy_forward(x_big, params, use_bf16=False))
    ref_big = _reference_forward(x_big, params)
    assert out_big.shape == (1024, action_dim)
    assert jnp.allclose(out_big, ref_big, atol=1e-5, rtol=1e-5)

    # 3) Ragged batch + multi-step grid (exercises the no-pad OOB-masked tail path).
    x_rag = jax.random.normal(k_rag, (1000, state_dim), jnp.float32)
    out_rag = jax.block_until_ready(
        policy_forward(x_rag, params, tile_m=512, use_bf16=False)
    )
    ref_rag = _reference_forward(x_rag, params)
    assert out_rag.shape == (1000, action_dim)
    assert jnp.allclose(out_rag, ref_rag, atol=1e-5, rtol=1e-5)

    # 4) Default bf16 MXU fast path (f32 accumulation); looser tolerance for bf16 rounding.
    out_bf16 = jax.block_until_ready(policy_forward(x_big, params))
    assert out_bf16.shape == (1024, action_dim)
    assert jnp.allclose(out_bf16, ref_big, atol=3e-2, rtol=3e-2)

    print("KERNEL_OK")
</pallas_src>

<mosaic_0001>
module attributes {stable_mosaic.version = 11 : i64} {
  func.func @_policy_kernel(%arg0: i32, %arg1: memref<8x8xf32, #tpu.memory_space<vmem>>, %arg2: memref<8x64xf32, #tpu.memory_space<vmem>>, %arg3: memref<1x64xf32, #tpu.memory_space<vmem>>, %arg4: memref<64x64xf32, #tpu.memory_space<vmem>>, %arg5: memref<1x64xf32, #tpu.memory_space<vmem>>, %arg6: memref<64x128xf32, #tpu.memory_space<vmem>>, %arg7: memref<1x128xf32, #tpu.memory_space<vmem>>, %arg8: memref<8x128xf32, #tpu.memory_space<vmem>>) attributes {dimension_semantics = [#tpu.dimension_semantics<parallel>], iteration_bounds = array<i64: 1>, scalar_prefetch = 0 : i64, scratch_operands = 0 : i64, tpu.core_type = #tpu.core_type<tc>, window_params = [{transform_indices = @transform_0, window_bounds = array<i64: 8, 8>}, {pipeline_mode = #tpu.pipeline_mode<synchronous>, transform_indices = @transform_1, window_bounds = array<i64: 8, 64>}, {pipeline_mode = #tpu.pipeline_mode<synchronous>, transform_indices = @transform_2, window_bounds = array<i64: 1, 64>}, {pipeline_mode = #tpu.pipeline_mode<synchronous>, transform_indices = @transform_3, window_bounds = array<i64: 64, 64>}, {pipeline_mode = #tpu.pipeline_mode<synchronous>, transform_indices = @transform_4, window_bounds = array<i64: 1, 64>}, {pipeline_mode = #tpu.pipeline_mode<synchronous>, transform_indices = @transform_5, window_bounds = array<i64: 64, 128>}, {pipeline_mode = #tpu.pipeline_mode<synchronous>, transform_indices = @transform_6, window_bounds = array<i64: 1, 128>}, {transform_indices = @transform_7, window_bounds = array<i64: 8, 128>}]} {
    %c0 = arith.constant 0 : index
    %c0_0 = arith.constant 0 : index
    %0 = vector.load %arg1[%c0, %c0_0] : memref<8x8xf32, #tpu.memory_space<vmem>>, vector<8x8xf32>
    %c0_1 = arith.constant 0 : index
    %c0_2 = arith.constant 0 : index
    %1 = vector.load %arg2[%c0_1, %c0_2] : memref<8x64xf32, #tpu.memory_space<vmem>>, vector<8x64xf32>
    %cst = arith.constant dense<0.000000e+00> : vector<8x64xf32>
    %2 = tpu.matmul %0, %1, %cst {dimension_numbers = #tpu.dot_dimension_numbers<[1], [0], [0], [1], [0, 0, 1, 1], [], []>} : vector<8x8xf32>, vector<8x64xf32>, vector<8x64xf32> -> vector<8x64xf32>
    %c0_3 = arith.constant 0 : index
    %c0_4 = arith.constant 0 : index
    %3 = vector.load %arg3[%c0_3, %c0_4] : memref<1x64xf32, #tpu.memory_space<vmem>>, vector<1x64xf32>
    %4 = vector.broadcast %3 : vector<1x64xf32> to vector<8x64xf32>
    %5 = arith.addf %2, %4 : vector<8x64xf32>
    %cst_5 = arith.constant 0.000000e+00 : f32
    %6 = vector.broadcast %cst_5 : f32 to vector<8x64xf32>
    %7 = arith.maximumf %5, %6 : vector<8x64xf32>
    %c0_6 = arith.constant 0 : index
    %c0_7 = arith.constant 0 : index
    %8 = vector.load %arg4[%c0_6, %c0_7] : memref<64x64xf32, #tpu.memory_space<vmem>>, vector<64x64xf32>
    %cst_8 = arith.constant dense<0.000000e+00> : vector<8x64xf32>
    %9 = tpu.matmul %7, %8, %cst_8 {dimension_numbers = #tpu.dot_dimension_numbers<[1], [0], [0], [1], [0, 0, 1, 1], [], []>} : vector<8x64xf32>, vector<64x64xf32>, vector<8x64xf32> -> vector<8x64xf32>
    %c0_9 = arith.constant 0 : index
    %c0_10 = arith.constant 0 : index
    %10 = vector.load %arg5[%c0_9, %c0_10] : memref<1x64xf32, #tpu.memory_space<vmem>>, vector<1x64xf32>
    %11 = vector.broadcast %10 : vector<1x64xf32> to vector<8x64xf32>
    %12 = arith.addf %9, %11 : vector<8x64xf32>
    %cst_11 = arith.constant 0.000000e+00 : f32
    %13 = vector.broadcast %cst_11 : f32 to vector<8x64xf32>
    %14 = arith.maximumf %12, %13 : vector<8x64xf32>
    %c0_12 = arith.constant 0 : index
    %c0_13 = arith.constant 0 : index
    %15 = vector.load %arg6[%c0_12, %c0_13] : memref<64x128xf32, #tpu.memory_space<vmem>>, vector<64x128xf32>
    %cst_14 = arith.constant dense<0.000000e+00> : vector<8x128xf32>
    %16 = tpu.matmul %14, %15, %cst_14 {dimension_numbers = #tpu.dot_dimension_numbers<[1], [0], [0], [1], [0, 0, 1, 1], [], []>} : vector<8x64xf32>, vector<64x128xf32>, vector<8x128xf32> -> vector<8x128xf32>
    %c0_15 = arith.constant 0 : index
    %c0_16 = arith.constant 0 : index
    %17 = vector.load %arg7[%c0_15, %c0_16] : memref<1x128xf32, #tpu.memory_space<vmem>>, vector<1x128xf32>
    %18 = vector.broadcast %17 : vector<1x128xf32> to vector<8x128xf32>
    %19 = arith.addf %16, %18 : vector<8x128xf32>
    %20 = math.tanh %19 : vector<8x128xf32>
    %c0_17 = arith.constant 0 : index
    %c0_18 = arith.constant 0 : index
    %21 = vector.load %arg8[%c0_17, %c0_18] : memref<8x128xf32, #tpu.memory_space<vmem>>, vector<8x128xf32>
    tpu.vector_store %arg8[%c0_17, %c0_18], %20 {strides = array<i32>} : memref<8x128xf32, #tpu.memory_space<vmem>>, vector<8x128xf32>,
    return
  }
  func.func @transform_0(%arg0: i32) -> (i32, i32) {
    %c0_i32 = arith.constant 0 : i32
    %c0_i32_0 = arith.constant 0 : i32
    return %arg0, %c0_i32 : i32, i32
  }
  func.func @transform_1(%arg0: i32) -> (i32, i32) {
    %c0_i32 = arith.constant 0 : i32
    %c0_i32_0 = arith.constant 0 : i32
    %c0_i32_1 = arith.constant 0 : i32
    return %c0_i32, %c0_i32_0 : i32, i32
  }
  func.func @transform_2(%arg0: i32) -> (i32, i32) {
    %c0_i32 = arith.constant 0 : i32
    %c0_i32_0 = arith.constant 0 : i32
    %c0_i32_1 = arith.constant 0 : i32
    return %c0_i32, %c0_i32_0 : i32, i32
  }
  func.func @transform_3(%arg0: i32) -> (i32, i32) {
    %c0_i32 = arith.constant 0 : i32
    %c0_i32_0 = arith.constant 0 : i32
    %c0_i32_1 = arith.constant 0 : i32
    return %c0_i32, %c0_i32_0 : i32, i32
  }
  func.func @transform_4(%arg0: i32) -> (i32, i32) {
    %c0_i32 = arith.constant 0 : i32
    %c0_i32_0 = arith.constant 0 : i32
    %c0_i32_1 = arith.constant 0 : i32
    return %c0_i32, %c0_i32_0 : i32, i32
  }
  func.func @transform_5(%arg0: i32) -> (i32, i32) {
    %c0_i32 = arith.constant 0 : i32
    %c0_i32_0 = arith.constant 0 : i32
    %c0_i32_1 = arith.constant 0 : i32
    return %c0_i32, %c0_i32_0 : i32, i32
  }
  func.func @transform_6(%arg0: i32) -> (i32, i32) {
    %c0_i32 = arith.constant 0 : i32
    %c0_i32_0 = arith.constant 0 : i32
    %c0_i32_1 = arith.constant 0 : i32
    return %c0_i32, %c0_i32_0 : i32, i32
  }
  func.func @transform_7(%arg0: i32) -> (i32, i32) {
    %c0_i32 = arith.constant 0 : i32
    %c0_i32_0 = arith.constant 0 : i32
    return %arg0, %c0_i32 : i32, i32
  }
}

</mosaic_0001>

<llo_original>
// kernel: policy_forward.1
$region0: #{policy_forward.1}
  #allocation0 [shape = 'u32[]', space=smem, size = 0x4, offset = 0x4, fixed_abs, tag = 'smem constant byte address 0x4 - core index']
  #allocation1 [shape = 'u32[72,128]{1,0:T(1,128)}', space=vmem, size = 0x9000, scoped, tag = 'internal scratch']
  %s0 = inlined_call_operand.vmem [shape: f32[8,8], index: 0, kind: input, shape index: {}]
  %s1 = inlined_call_operand.vmem [shape: f32[8,64], index: 1, kind: input, shape index: {}]
  %s2 = inlined_call_operand.vmem [shape: f32[1,64], index: 2, kind: input, shape index: {}]
  %s3 = inlined_call_operand.vmem [shape: f32[64,64], index: 3, kind: input, shape index: {}]
  %s4 = inlined_call_operand.vmem [shape: f32[1,64], index: 4, kind: input, shape index: {}]
  %s5 = inlined_call_operand.vmem [shape: f32[64,128], index: 5, kind: input, shape index: {}]
  %s6 = inlined_call_operand.vmem [shape: f32[1,128], index: 6, kind: input, shape index: {}]
  %s7 = inlined_call_operand.vmem [shape: f32[8,128], index: 7, kind: output, shape index: {}]
  %s8 = sld [smem:[#allocation0]]
  $region38: #{policy_forward.1} parent=0
    _
  %s10 = ssub.s32 1, %s8
  %s11 = scalar_select 0, %s10, %s8
  // Predicated region
  $region2: #{policy_forward.1} parent=0 // pred_check
    _
  $region3: #{policy_forward.1} parent=0 // pred_check_branch
    %13 = sbr.rel (0) target = $region5
  $region4: #{policy_forward.1} parent=0 // pred_region
    _
  $region5: #{policy_forward.1} parent=0 // pred_fallthru
    _
  // Predicated region
  $region6: #{policy_forward.1} parent=0 // pred_check
    _
  $region7: #{policy_forward.1} parent=0 // pred_check_branch
    %15 = sbr.rel (0) target = $region9
  $region8: #{policy_forward.1} parent=0 // pred_region
    _
  $region9: #{policy_forward.1} parent=0 // pred_fallthru
    _
  // Predicated region
  $region10: #{policy_forward.1} parent=0 // pred_check
    _
  $region11: #{policy_forward.1} parent=0 // pred_check_branch
    %17 = sbr.rel (0) target = $region13
  $region12: #{policy_forward.1} parent=0 // pred_region
    _
  $region13: #{policy_forward.1} parent=0 // pred_fallthru
    _
  // Predicated region
  $region14: #{policy_forward.1} parent=0 // pred_check
    _
  $region15: #{policy_forward.1} parent=0 // pred_check_branch
    %19 = sbr.rel (0) target = $region17
  $region16: #{policy_forward.1} parent=0 // pred_region
    _
  $region17: #{policy_forward.1} parent=0 // pred_fallthru
    _
  // Predicated region
  $region18: #{policy_forward.1} parent=0 // pred_check
    _
  $region19: #{policy_forward.1} parent=0 // pred_check_branch
    %21 = sbr.rel (0) target = $region21
  $region20: #{policy_forward.1} parent=0 // pred_region
    _
  $region21: #{policy_forward.1} parent=0 // pred_fallthru
    _
  // Predicated region
  $region22: #{policy_forward.1} parent=0 // pred_check
    _
  $region23: #{policy_forward.1} parent=0 // pred_check_branch
    %23 = sbr.rel (0) target = $region25
  $region24: #{policy_forward.1} parent=0 // pred_region
    _
  $region25: #{policy_forward.1} parent=0 // pred_fallthru
    _
  // Predicated region
  $region26: #{policy_forward.1} parent=0 // pred_check
    _
  $region27: #{policy_forward.1} parent=0 // pred_check_branch
    %25 = sbr.rel (0) target = $region29
  $region28: #{policy_forward.1} parent=0 // pred_region
    _
  $region29: #{policy_forward.1} parent=0 // pred_fallthru
    _
  %v26 = vld [vmem:[%s0] sm:$0xff]
  %v27 = vld [vmem:[%s1] sm:$0xff]
  %v28 = vld [vmem:[%s2] sm:$0x1]
  %v30 = vperm.slane %v28, 0
  %vm32 = vcmask 64512
  %v34 = vsel %vm32, %v26, 0
  %36 = vmatpush.msra.mxu0 0.0
  %37 = vmatpush.msra.mxu0 0.0
  %38 = vmatpush.msra.mxu0 0.0
  %39 = vmatpush.msra.mxu0 0.0
  %40 = vmatpush.msra.mxu0 0.0
  %41 = vmatpush.msra.mxu0 0.0
  %42 = vmatpush.msra.mxu0 0.0
  %43 = vmatpush.msra.mxu0 0.0
  %44 = vmatpush.msra.mxu0 0.0
  %45 = vmatpush.msra.mxu0 0.0
  %46 = vmatpush.msra.mxu0 0.0
  %47 = vmatpush.msra.mxu0 0.0
  %48 = vmatpush.msra.mxu0 0.0
  %49 = vmatpush.msra.mxu0 0.0
  %50 = vmatpush.msra.mxu0 0.0
  %51 = vmatpush.msra.mxu0 %v27
  %52 = vmatmul.f32.gmra.mxu0 %v34
  %v53 = vpop.f32.mrf.mxu0
  %v54 = vadd.f32 %v30, %v53
  %55 = vdwg.mxu0
  %v56 = vmax.f32 %v54, 0.0
  %v57 = vld [vmem:[%s3] sm:$0xff]
  %v58 = vld [vmem:[%s3 + $0x8] sm:$0xff]
  %v59 = vld [vmem:[%s3 + $0x10] sm:$0xff]
  %v60 = vld [vmem:[%s3 + $0x18] sm:$0xff]
  %v61 = vld [vmem:[%s3 + $0x20] sm:$0xff]
  %v62 = vld [vmem:[%s3 + $0x28] sm:$0xff]
  %v63 = vld [vmem:[%s3 + $0x30] sm:$0xff]
  %v64 = vld [vmem:[%s3 + $0x38] sm:$0xff]
  %v65 = vld [vmem:[%s4] sm:$0x1]
  %v67 = vperm.slane %v65, 0
  %vm69 = vcmask 523264
  %v71 = vsel %vm69, %v56, 0
  %73 = vmatpush.msra.mxu0 0.0
  %74 = vmatpush.msra.mxu0 0.0
  %75 = vmatpush.msra.mxu0 0.0
  %76 = vmatpush.msra.mxu0 0.0
  %77 = vmatpush.msra.mxu0 0.0
  %78 = vmatpush.msra.mxu0 0.0
  %79 = vmatpush.msra.mxu0 0.0
  %80 = vmatpush.msra.mxu0 0.0
  %81 = vmatpush.msra.mxu0 %v64
  %82 = vmatpush.msra.mxu0 %v63
  %83 = vmatpush.msra.mxu0 %v62
  %84 = vmatpush.msra.mxu0 %v61
  %85 = vmatpush.msra.mxu0 %v60
  %86 = vmatpush.msra.mxu0 %v59
  %87 = vmatpush.msra.mxu0 %v58
  %88 = vmatpush.msra.mxu0 %v57
  %89 = vmatmul.f32.gmra.mxu0 %v71
  %v90 = vpop.f32.mrf.mxu0
  %v91 = vadd.f32 %v67, %v90
  %92 = vdwg.mxu0
  %v93 = vmax.f32 %v91, 0.0
  %v94 = vld [vmem:[%s5] sm:$0xff]
  %v95 = vld [vmem:[%s5 + $0x8] sm:$0xff]
  %v96 = vld [vmem:[%s5 + $0x10] sm:$0xff]
  %v97 = vld [vmem:[%s5 + $0x18] sm:$0xff]
  %v98 = vld [vmem:[%s5 + $0x20] sm:$0xff]
  %v99 = vld [vmem:[%s5 + $0x28] sm:$0xff]
  %v100 = vld [vmem:[%s5 + $0x30] sm:$0xff]
  %v101 = vld [vmem:[%s5 + $0x38] sm:$0xff]
  %v102 = vld [vmem:[%s6] sm:$0x1]
  %v104 = vperm.slane %v102, 0
  %v107 = vsel %vm69, %v93, 0
  %109 = vmatpush.msra.mxu0 0.0
  %110 = vmatpush.msra.mxu0 0.0
  %111 = vmatpush.msra.mxu0 0.0
  %112 = vmatpush.msra.mxu0 0.0
  %113 = vmatpush.msra.mxu0 0.0
  %114 = vmatpush.msra.mxu0 0.0
  %115 = vmatpush.msra.mxu0 0.0
  %116 = vmatpush.msra.mxu0 0.0
  %117 = vmatpush.msra.mxu0 %v101
  %118 = vmatpush.msra.mxu0 %v100
  %119 = vmatpush.msra.mxu0 %v99
  %120 = vmatpush.msra.mxu0 %v98
  %121 = vmatpush.msra.mxu0 %v97
  %122 = vmatpush.msra.mxu0 %v96
  %123 = vmatpush.msra.mxu0 %v95
  %124 = vmatpush.msra.mxu0 %v94
  %125 = vmatmul.f32.gmra.mxu0 %v107
  %v126 = vpop.f32.mrf.mxu0
  %v127 = vadd.f32 %v104, %v126
  %128 = vdwg.mxu0
  %v129 = vtanh.pop %v127
  %130 = vst [vmem:[%s7] sm:$0xff] %v129
  // Predicated region
  $region30: #{policy_forward.1} parent=0 // pred_check
    _
  $region31: #{policy_forward.1} parent=0 // pred_check_branch
    %132 = sbr.rel (0) target = $region33
  $region32: #{policy_forward.1} parent=0 // pred_region
    _
  $region33: #{policy_forward.1} parent=0 // pred_fallthru
    _
  // Predicated region
  $region34: #{policy_forward.1} parent=0 // pred_check
    _
  $region35: #{policy_forward.1} parent=0 // pred_check_branch
    %134 = sbr.rel (0) target = $region37
  $region36: #{policy_forward.1} parent=0 // pred_region
    _
  $region37: #{policy_forward.1} parent=0 // pred_fallthru
    _

</llo_original>
